<compile_context>
chip_gen: v7x
topology: tpu7x:2x2x1
jax: 0.10.0
libtpu: 0.0.40
codegen_flags: <defaults>
</compile_context>

<pallas_src>
import functools

import jax
import jax.numpy as jnp
from jax.experimental import pallas as pl
from jax.experimental.pallas import tpu as pltpu


def _mixer_kernel(x_ref, scale_ref, shift_ref, inv_scale_ref,
                  tm_w_ref, tm_b_ref,
                  fm_w1_ref, fm_b1_ref,
                  fm_w2_ref, fm_b2_ref,
                  out_w_ref, out_b_ref,
                  o_ref, *, eps):
    """Fused Mixer forward (eval mode), fully VMEM-resident.

    x_ref        : (B, F, L)   raw input (layout swizzle done in-kernel)
    scale_ref    : (1, F)      RevIN scale
    shift_ref    : (1, F)      RevIN shift
    inv_scale_ref: (1, F)      1 / RevIN scale (precomputed in f32)
    tm_w_ref     : (NL, L, L)  time-mixing weight, BN pre-folded  [out_t, in_t]
    tm_b_ref     : (NL, L, 1)  time-mixing bias, BN pre-folded
    fm_w1_ref    : (NL, F, H)  feat-mixing Linear1 weight (transposed, BN folded)
    fm_b1_ref    : (NL, 1, H)
    fm_w2_ref    : (NL, H, F)  feat-mixing Linear2 weight (transposed)
    fm_b2_ref    : (NL, 1, F)
    out_w_ref    : (Fc, L)     temporal projection weight [out_t, in_t]
    out_b_ref    : (Fc, 1)
    o_ref        : (B, Fc, F)
    """
    B, F, L = x_ref.shape
    num_layers = tm_w_ref.shape[0]
    f32 = jnp.float32

    # ---- layout: (B, F, L) -> (L, B*F); time on sublanes, batch*feat on lanes.
    # Per-batch 2-D transpose + lane concat (cheap XLU work, no wrapper HLO).
    h = jnp.concatenate(
        [jnp.transpose(x_ref[b].astype(f32)) for b in range(B)], axis=1)   # (L, B*F)

    # Per-feature RevIN params tiled across the batch-major lane axis (once).
    scale_bf = jnp.concatenate([scale_ref[...]] * B, axis=1)               # (1, B*F)
    shift_bf = jnp.concatenate([shift_ref[...]] * B, axis=1)               # (1, B*F)
    inv_scale_bf = jnp.concatenate([inv_scale_ref[...]] * B, axis=1)       # (1, B*F)

    # ---- RevIN: per-(batch, feature) stats over time (sublane reduction).
    # NOTE: unbiased variance assumes L >= 2 (guarded in the wrapper).
    mean = jnp.mean(h, axis=0, keepdims=True)                              # (1, B*F)
    centered = h - mean
    var = jnp.sum(centered * centered, axis=0, keepdims=True) * (1.0 / (L - 1))
    inv_std = jax.lax.rsqrt(var + eps)                                     # EUP
    stdev = (var + eps) * inv_std                                          # = sqrt(var+eps)
    h = centered * inv_std * scale_bf + shift_bf

    # ---- Mixer layers (NL is small -> static unroll; use fori_loop if it grows).
    for l in range(num_layers):
        # Time mixing: one 2-D MXU dot over the whole batch. Eval BatchNorm and
        # dropout are already folded / identity.
        y = jnp.dot(tm_w_ref[l], h, preferred_element_type=f32)            # (L, B*F)
        h = h + jnp.maximum(y + tm_b_ref[l], 0.0)

        # Feature mixing: regroup lanes -> rows (row order irrelevant to a
        # per-row MLP), then two 2-D dots over the whole batch.
        hf = jnp.concatenate(
            [h[:, b * F:(b + 1) * F] for b in range(B)], axis=0)           # (B*L, F)
        z = jnp.dot(hf, fm_w1_ref[l], preferred_element_type=f32) + fm_b1_ref[l]
        z = jnp.maximum(z, 0.0)                                            # (B*L, H)
        z = jnp.dot(z, fm_w2_ref[l], preferred_element_type=f32) + fm_b2_ref[l]
        h = h + jnp.concatenate(
            [z[b * L:(b + 1) * L, :] for b in range(B)], axis=1)           # (L, B*F)

    # ---- Temporal projection (OutLayer): one 2-D dot.
    o = jnp.dot(out_w_ref[...], h, preferred_element_type=f32) + out_b_ref[...]  # (Fc, B*F)

    # ---- Undo RevIN (multiplies only; inv_scale precomputed in f32).
    o = (o - shift_bf) * inv_scale_bf
    o = o * stdev + mean

    # ---- Write (B, Fc, F): static lane slice per batch element.
    for b in range(B):
        o_ref[b] = o[:, b * F:(b + 1) * F].astype(o_ref.dtype)


def prepare_mixer_params(params, *, bn_eps=1e-5):
    """One-time parameter preparation (call at model load, NOT per forward).

    Folds eval-mode BatchNorm2d(1) (a scalar affine a*x + c) exactly into the
    following Linear of each sub-block, transposes the feature-MLP weights for
    straight matmuls, and precomputes 1/scale in f32.
    """
    f32 = jnp.float32
    NL, L, _ = params['tm_w'].shape
    H, F = params['fm_w1'].shape[1], params['fm_w1'].shape[2]
    Fc = params['out_w'].shape[0]

    a_tm = params['bn_tm_w'] / jnp.sqrt(params['bn_tm_rv'] + bn_eps)       # (NL,)
    c_tm = params['bn_tm_b'] - params['bn_tm_rm'] * a_tm
    a_fm = params['bn_fm_w'] / jnp.sqrt(params['bn_fm_rv'] + bn_eps)
    c_fm = params['bn_fm_b'] - params['bn_fm_rm'] * a_fm

    tm_w = params['tm_w'].astype(f32)
    tm_w_f = tm_w * a_tm[:, None, None]                                    # (NL, L, L)
    tm_b_f = (params['tm_b'].astype(f32)
              + c_tm[:, None] * jnp.sum(tm_w, axis=2)).reshape(NL, L, 1)

    fm_w1 = params['fm_w1'].astype(f32)                                    # (NL, H, F)
    fm_w1_f = jnp.swapaxes(fm_w1 * a_fm[:, None, None], 1, 2)              # (NL, F, H)
    fm_b1_f = (params['fm_b1'].astype(f32)
               + c_fm[:, None] * jnp.sum(fm_w1, axis=2)).reshape(NL, 1, H)

    fm_w2_f = jnp.swapaxes(params['fm_w2'].astype(f32), 1, 2)              # (NL, H, F)
    fm_b2_f = params['fm_b2'].astype(f32).reshape(NL, 1, F)

    scale = params['scale'].astype(f32)
    prep = dict(
        scale=scale.reshape(1, F),
        shift=params['shift'].astype(f32).reshape(1, F),
        inv_scale=(1.0 / scale).reshape(1, F),
        tm_w=tm_w_f, tm_b=tm_b_f,
        fm_w1t=fm_w1_f, fm_b1=fm_b1_f,
        fm_w2t=fm_w2_f, fm_b2=fm_b2_f,
        out_w=params['out_w'].astype(f32),
        out_b=params['out_b'].astype(f32).reshape(Fc, 1),
    )
    return jax.tree_util.tree_map(jnp.asarray, prep)


def mixer_forward(x, prep, *, eps=1e-8):
    """x: (B, no_feats, input_length) -> (B, forecast_length, no_feats)."""
    B, F, L = x.shape
    assert L >= 2, "unbiased variance over time requires input_length >= 2"
    NL = prep['tm_w'].shape[0]
    H = prep['fm_w1t'].shape[2]
    Fc = prep['out_w'].shape[0]

    inputs = (x, prep['scale'], prep['shift'], prep['inv_scale'],
              prep['tm_w'], prep['tm_b'], prep['fm_w1t'], prep['fm_b1'],
              prep['fm_w2t'], prep['fm_b2'], prep['out_w'], prep['out_b'])

    flops = (NL * (2 * L * L * B * F + 4 * B * L * F * H)     # time + feat matmuls
             + 2 * Fc * L * B * F                             # temporal projection
             + 14 * NL * B * L * F + 12 * B * L * F)          # elementwise epilogues
    bytes_accessed = int(sum(int(a.size) * a.dtype.itemsize for a in inputs)
                         + B * Fc * F * x.dtype.itemsize)

    vmem = pltpu.MemorySpace.VMEM
    # Grid-less call: the whole problem (~50 KB) is VMEM-resident, weights are
    # DMA'd exactly once.  If B scales up, add a leading "parallel" batch grid
    # axis (2 TensorCores on v7x) and set vmem_limit_bytes against 64 MiB.
    return pl.pallas_call(
        functools.partial(_mixer_kernel, eps=eps),
        out_shape=jax.ShapeDtypeStruct((B, Fc, F), x.dtype),
        in_specs=[pl.BlockSpec(memory_space=vmem)] * len(inputs),
        out_specs=pl.BlockSpec(memory_space=vmem),
        cost_estimate=pl.CostEstimate(flops=int(flops),
                                      transcendentals=int(B * F),
                                      bytes_accessed=bytes_accessed),
    )(*inputs)


def mixer_reference(x, params, *, eps=1e-8, bn_eps=1e-5):
    """Plain-JAX replication of the PyTorch Mixer.forward (eval mode)."""
    xp = jnp.swapaxes(x, 1, 2)                                  # (B, L, F)
    mean = jnp.mean(xp, axis=1, keepdims=True)
    var = jnp.var(xp, axis=1, keepdims=True, ddof=1)            # torch.var is unbiased
    s = jnp.sqrt(var + eps)
    h = (xp - mean) / s
    h = h * params['scale'] + params['shift']

    def bn_eval(v, w, b, rm, rv):
        return (v - rm) / jnp.sqrt(rv + bn_eps) * w + b

    NL = params['tm_w'].shape[0]
    for l in range(NL):
        y = bn_eval(h, params['bn_tm_w'][l], params['bn_tm_b'][l],
                    params['bn_tm_rm'][l], params['bn_tm_rv'][l])
        y = jnp.swapaxes(y, 1, 2)                               # (B, F, L)
        y = y @ params['tm_w'][l].T + params['tm_b'][l]
        y = jnp.maximum(y, 0.0)
        y = jnp.swapaxes(y, 1, 2)
        h = h + y                                               # dropout = identity

        y = bn_eval(h, params['bn_fm_w'][l], params['bn_fm_b'][l],
                    params['bn_fm_rm'][l], params['bn_fm_rv'][l])
        y = jnp.maximum(y @ params['fm_w1'][l].T + params['fm_b1'][l], 0.0)
        y = y @ params['fm_w2'][l].T + params['fm_b2'][l]
        h = h + y

    y = jnp.swapaxes(h, 1, 2)                                   # (B, F, L)
    y = y @ params['out_w'].T + params['out_b']
    y = jnp.swapaxes(y, 1, 2)                                   # (B, Fc, F)
    y = (y - params['shift']) / params['scale']
    y = y * s + mean
    return y


if __name__ == "__main__":
    # Small shapes consistent with the module:
    #   batch=2, no_feats=32, input_length=16, forecast_length=8,
    #   feat_mixing_hidden_channels=64, no_mixer_layers=2, dropout=0 (eval).
    B, F, L, Fc, H, NL = 2, 32, 16, 8, 64, 2
    eps, bn_eps = 1e-8, 1e-5

    key = jax.random.PRNGKey(0)
    kit = iter(jax.random.split(key, 32))

    def uniform(k, shape, bound):
        return jax.random.uniform(k, shape, minval=-bound, maxval=bound,
                                  dtype=jnp.float32)

    def linear(out_f, in_f):
        bound = 1.0 / (in_f ** 0.5)
        return (uniform(next(kit), (out_f, in_f), bound),
                uniform(next(kit), (out_f,), bound))

    x = jax.random.normal(next(kit), (B, F, L), dtype=jnp.float32)

    tm_w, tm_b, fm_w1, fm_b1, fm_w2, fm_b2 = [], [], [], [], [], []
    for _ in range(NL):
        w, b = linear(L, L);  tm_w.append(w);  tm_b.append(b)
        w, b = linear(H, F);  fm_w1.append(w); fm_b1.append(b)
        w, b = linear(F, H);  fm_w2.append(w); fm_b2.append(b)
    out_w, out_b = linear(Fc, L)

    params = dict(
        scale=1.0 + 0.1 * jax.random.normal(next(kit), (F,), dtype=jnp.float32),
        shift=0.1 * jax.random.normal(next(kit), (F,), dtype=jnp.float32),
        tm_w=jnp.stack(tm_w), tm_b=jnp.stack(tm_b),
        fm_w1=jnp.stack(fm_w1), fm_b1=jnp.stack(fm_b1),
        fm_w2=jnp.stack(fm_w2), fm_b2=jnp.stack(fm_b2),
        out_w=out_w, out_b=out_b,
        # Eval-mode BatchNorm2d(num_features=1) state for the two NormLayers
        # (time-mixer norm and feat-mixer norm) of each MixerLayer.
        bn_tm_w=1.0 + 0.05 * jax.random.normal(next(kit), (NL,), dtype=jnp.float32),
        bn_tm_b=0.05 * jax.random.normal(next(kit), (NL,), dtype=jnp.float32),
        bn_tm_rm=0.1 * jax.random.normal(next(kit), (NL,), dtype=jnp.float32),
        bn_tm_rv=jax.random.uniform(next(kit), (NL,), minval=0.5, maxval=1.5,
                                    dtype=jnp.float32),
        bn_fm_w=1.0 + 0.05 * jax.random.normal(next(kit), (NL,), dtype=jnp.float32),
        bn_fm_b=0.05 * jax.random.normal(next(kit), (NL,), dtype=jnp.float32),
        bn_fm_rm=0.1 * jax.random.normal(next(kit), (NL,), dtype=jnp.float32),
        bn_fm_rv=jax.random.uniform(next(kit), (NL,), minval=0.5, maxval=1.5,
                                    dtype=jnp.float32),
    )

    # One-time parameter preparation (constant plumbing hoisted out of the
    # per-call path); steady-state calls only touch x.
    prep = prepare_mixer_params(params, bn_eps=bn_eps)
    prep = jax.tree_util.tree_map(jax.block_until_ready, prep)

    out = mixer_forward(x, prep, eps=eps)
    out = jax.block_until_ready(out)

    ref = mixer_reference(x, params, eps=eps, bn_eps=bn_eps)

    assert out.shape == (B, Fc, F), out.shape
    assert jnp.allclose(out, ref, atol=1e-3, rtol=1e-3), \
        float(jnp.max(jnp.abs(out - ref)))

    print("KERNEL_OK")
</pallas_src>

<mosaic_0001>
module attributes {stable_mosaic.version = 11 : i64} {
  func.func @_mixer_kernel(%arg0: memref<2x32x16xf32, #tpu.memory_space<vmem>>, %arg1: memref<1x32xf32, #tpu.memory_space<vmem>>, %arg2: memref<1x32xf32, #tpu.memory_space<vmem>>, %arg3: memref<1x32xf32, #tpu.memory_space<vmem>>, %arg4: memref<2x16x16xf32, #tpu.memory_space<vmem>>, %arg5: memref<2x16x1xf32, #tpu.memory_space<vmem>>, %arg6: memref<2x32x64xf32, #tpu.memory_space<vmem>>, %arg7: memref<2x1x64xf32, #tpu.memory_space<vmem>>, %arg8: memref<2x64x32xf32, #tpu.memory_space<vmem>>, %arg9: memref<2x1x32xf32, #tpu.memory_space<vmem>>, %arg10: memref<8x16xf32, #tpu.memory_space<vmem>>, %arg11: memref<8x1xf32, #tpu.memory_space<vmem>>, %arg12: memref<2x8x32xf32, #tpu.memory_space<vmem>>) attributes {dimension_semantics = [], scalar_prefetch = 0 : i64, scratch_operands = 0 : i64, tpu.core_type = #tpu.core_type<tc>} {
    %c0 = arith.constant 0 : index
    %c0_0 = arith.constant 0 : index
    %c0_1 = arith.constant 0 : index
    %0 = vector.load %arg0[%c0, %c0_0, %c0_1] : memref<2x32x16xf32, #tpu.memory_space<vmem>>, vector<1x32x16xf32>
    %1 = vector.shape_cast %0 : vector<1x32x16xf32> to vector<32x16xf32>
    %2 = tpu.transpose %1, [1, 0] : vector<32x16xf32> -> vector<16x32xf32>
    %c1 = arith.constant 1 : index
    %c0_2 = arith.constant 0 : index
    %c0_3 = arith.constant 0 : index
    %3 = vector.load %arg0[%c1, %c0_2, %c0_3] : memref<2x32x16xf32, #tpu.memory_space<vmem>>, vector<1x32x16xf32>
    %4 = vector.shape_cast %3 : vector<1x32x16xf32> to vector<32x16xf32>
    %5 = tpu.transpose %4, [1, 0] : vector<32x16xf32> -> vector<16x32xf32>
    %6 = tpu.concatenate %2, %5 in 1 : vector<16x32xf32>, vector<16x32xf32> -> vector<16x64xf32>
    %c0_4 = arith.constant 0 : index
    %c0_5 = arith.constant 0 : index
    %7 = vector.load %arg1[%c0_4, %c0_5] : memref<1x32xf32, #tpu.memory_space<vmem>>, vector<1x32xf32>
    %8 = tpu.concatenate %7, %7 in 1 : vector<1x32xf32>, vector<1x32xf32> -> vector<1x64xf32>
    %c0_6 = arith.constant 0 : index
    %c0_7 = arith.constant 0 : index
    %9 = vector.load %arg2[%c0_6, %c0_7] : memref<1x32xf32, #tpu.memory_space<vmem>>, vector<1x32xf32>
    %10 = tpu.concatenate %9, %9 in 1 : vector<1x32xf32>, vector<1x32xf32> -> vector<1x64xf32>
    %c0_8 = arith.constant 0 : index
    %c0_9 = arith.constant 0 : index
    %11 = vector.load %arg3[%c0_8, %c0_9] : memref<1x32xf32, #tpu.memory_space<vmem>>, vector<1x32xf32>
    %12 = tpu.concatenate %11, %11 in 1 : vector<1x32xf32>, vector<1x32xf32> -> vector<1x64xf32>
    %cst = arith.constant dense<0.000000e+00> : vector<64xf32>
    %13 = vector.multi_reduction <add>, %6, %cst [0] : vector<16x64xf32> to vector<64xf32>
    %14 = vector.shape_cast %13 : vector<64xf32> to vector<1x64xf32>
    %cst_10 = arith.constant 1.600000e+01 : f32
    %15 = vector.broadcast %cst_10 : f32 to vector<1x64xf32>
    %16 = arith.divf %14, %15 : vector<1x64xf32>
    %17 = vector.broadcast %16 : vector<1x64xf32> to vector<16x64xf32>
    %18 = arith.subf %6, %17 : vector<16x64xf32>
    %19 = arith.mulf %18, %18 : vector<16x64xf32>
    %cst_11 = arith.constant dense<0.000000e+00> : vector<64xf32>
    %20 = vector.multi_reduction <add>, %19, %cst_11 [0] : vector<16x64xf32> to vector<64xf32>
    %21 = vector.shape_cast %20 : vector<64xf32> to vector<1x64xf32>
    %cst_12 = arith.constant 0.0666666701 : f32
    %22 = vector.broadcast %cst_12 : f32 to vector<1x64xf32>
    %23 = arith.mulf %21, %22 : vector<1x64xf32>
    %cst_13 = arith.constant 9.99999993E-9 : f32
    %24 = vector.broadcast %cst_13 : f32 to vector<1x64xf32>
    %25 = arith.addf %23, %24 : vector<1x64xf32>
    %26 = math.rsqrt %25 : vector<1x64xf32>
    %cst_14 = arith.constant 9.99999993E-9 : f32
    %27 = vector.broadcast %cst_14 : f32 to vector<1x64xf32>
    %28 = arith.addf %23, %27 : vector<1x64xf32>
    %29 = arith.mulf %28, %26 : vector<1x64xf32>
    %30 = vector.broadcast %26 : vector<1x64xf32> to vector<16x64xf32>
    %31 = arith.mulf %18, %30 : vector<16x64xf32>
    %32 = vector.broadcast %8 : vector<1x64xf32> to vector<16x64xf32>
    %33 = arith.mulf %31, %32 : vector<16x64xf32>
    %34 = vector.broadcast %10 : vector<1x64xf32> to vector<16x64xf32>
    %35 = arith.addf %33, %34 : vector<16x64xf32>
    %c0_15 = arith.constant 0 : index
    %c0_16 = arith.constant 0 : index
    %c0_17 = arith.constant 0 : index
    %36 = vector.load %arg4[%c0_15, %c0_16, %c0_17] : memref<2x16x16xf32, #tpu.memory_space<vmem>>, vector<1x16x16xf32>
    %37 = vector.shape_cast %36 : vector<1x16x16xf32> to vector<16x16xf32>
    %cst_18 = arith.constant dense<0.000000e+00> : vector<16x64xf32>
    %38 = tpu.matmul %37, %35, %cst_18 {dimension_numbers = #tpu.dot_dimension_numbers<[1], [0], [0], [1], [0, 0, 1, 1], [], []>} : vector<16x16xf32>, vector<16x64xf32>, vector<16x64xf32> -> vector<16x64xf32>
    %c0_19 = arith.constant 0 : index
    %c0_20 = arith.constant 0 : index
    %c0_21 = arith.constant 0 : index
    %39 = vector.load %arg5[%c0_19, %c0_20, %c0_21] : memref<2x16x1xf32, #tpu.memory_space<vmem>>, vector<1x16x1xf32>
    %40 = vector.shape_cast %39 : vector<1x16x1xf32> to vector<16x1xf32>
    %41 = vector.broadcast %40 : vector<16x1xf32> to vector<16x64xf32>
    %42 = arith.addf %38, %41 : vector<16x64xf32>
    %cst_22 = arith.constant 0.000000e+00 : f32
    %43 = vector.broadcast %cst_22 : f32 to vector<16x64xf32>
    %44 = arith.maximumf %42, %43 : vector<16x64xf32>
    %45 = arith.addf %35, %44 : vector<16x64xf32>
    %46 = vector.extract_strided_slice %45 {offsets = [0, 0], sizes = [16, 32], strides = [1, 1]} : vector<16x64xf32> to vector<16x32xf32>
    %47 = vector.extract_strided_slice %45 {offsets = [0, 32], sizes = [16, 32], strides = [1, 1]} : vector<16x64xf32> to vector<16x32xf32>
    %48 = tpu.concatenate %46, %47 in 0 : vector<16x32xf32>, vector<16x32xf32> -> vector<32x32xf32>
    %c0_23 = arith.constant 0 : index
    %c0_24 = arith.constant 0 : index
    %c0_25 = arith.constant 0 : index
    %49 = vector.load %arg6[%c0_23, %c0_24, %c0_25] : memref<2x32x64xf32, #tpu.memory_space<vmem>>, vector<1x32x64xf32>
    %50 = vector.shape_cast %49 : vector<1x32x64xf32> to vector<32x64xf32>
    %cst_26 = arith.constant dense<0.000000e+00> : vector<32x64xf32>
    %51 = tpu.matmul %48, %50, %cst_26 {dimension_numbers = #tpu.dot_dimension_numbers<[1], [0], [0], [1], [0, 0, 1, 1], [], []>} : vector<32x32xf32>, vector<32x64xf32>, vector<32x64xf32> -> vector<32x64xf32>
    %c0_27 = arith.constant 0 : index
    %c0_28 = arith.constant 0 : index
    %c0_29 = arith.constant 0 : index
    %52 = vector.load %arg7[%c0_27, %c0_28, %c0_29] : memref<2x1x64xf32, #tpu.memory_space<vmem>>, vector<1x1x64xf32>
    %53 = vector.shape_cast %52 : vector<1x1x64xf32> to vector<1x64xf32>
    %54 = vector.broadcast %53 : vector<1x64xf32> to vector<32x64xf32>
    %55 = arith.addf %51, %54 : vector<32x64xf32>
    %cst_30 = arith.constant 0.000000e+00 : f32
    %56 = vector.broadcast %cst_30 : f32 to vector<32x64xf32>
    %57 = arith.maximumf %55, %56 : vector<32x64xf32>
    %c0_31 = arith.constant 0 : index
    %c0_32 = arith.constant 0 : index
    %c0_33 = arith.constant 0 : index
    %58 = vector.load %arg8[%c0_31, %c0_32, %c0_33] : memref<2x64x32xf32, #tpu.memory_space<vmem>>, vector<1x64x32xf32>
    %59 = vector.shape_cast %58 : vector<1x64x32xf32> to vector<64x32xf32>
    %cst_34 = arith.constant dense<0.000000e+00> : vector<32x32xf32>
    %60 = tpu.matmul %57, %59, %cst_34 {dimension_numbers = #tpu.dot_dimension_numbers<[1], [0], [0], [1], [0, 0, 1, 1], [], []>} : vector<32x64xf32>, vector<64x32xf32>, vector<32x32xf32> -> vector<32x32xf32>
    %c0_35 = arith.constant 0 : index
    %c0_36 = arith.constant 0 : index
    %c0_37 = arith.constant 0 : index
    %61 = vector.load %arg9[%c0_35, %c0_36, %c0_37] : memref<2x1x32xf32, #tpu.memory_space<vmem>>, vector<1x1x32xf32>
    %62 = vector.shape_cast %61 : vector<1x1x32xf32> to vector<1x32xf32>
    %63 = vector.broadcast %62 : vector<1x32xf32> to vector<32x32xf32>
    %64 = arith.addf %60, %63 : vector<32x32xf32>
    %65 = vector.extract_strided_slice %64 {offsets = [0, 0], sizes = [16, 32], strides = [1, 1]} : vector<32x32xf32> to vector<16x32xf32>
    %66 = vector.extract_strided_slice %64 {offsets = [16, 0], sizes = [16, 32], strides = [1, 1]} : vector<32x32xf32> to vector<16x32xf32>
    %67 = tpu.concatenate %65, %66 in 1 : vector<16x32xf32>, vector<16x32xf32> -> vector<16x64xf32>
    %68 = arith.addf %45, %67 : vector<16x64xf32>
    %c1_38 = arith.constant 1 : index
    %c0_39 = arith.constant 0 : index
    %c0_40 = arith.constant 0 : index
    %69 = vector.load %arg4[%c1_38, %c0_39, %c0_40] : memref<2x16x16xf32, #tpu.memory_space<vmem>>, vector<1x16x16xf32>
    %70 = vector.shape_cast %69 : vector<1x16x16xf32> to vector<16x16xf32>
    %cst_41 = arith.constant dense<0.000000e+00> : vector<16x64xf32>
    %71 = tpu.matmul %70, %68, %cst_41 {dimension_numbers = #tpu.dot_dimension_numbers<[1], [0], [0], [1], [0, 0, 1, 1], [], []>} : vector<16x16xf32>, vector<16x64xf32>, vector<16x64xf32> -> vector<16x64xf32>
    %c1_42 = arith.constant 1 : index
    %c0_43 = arith.constant 0 : index
    %c0_44 = arith.constant 0 : index
    %72 = vector.load %arg5[%c1_42, %c0_43, %c0_44] : memref<2x16x1xf32, #tpu.memory_space<vmem>>, vector<1x16x1xf32>
    %73 = vector.shape_cast %72 : vector<1x16x1xf32> to vector<16x1xf32>
    %74 = vector.broadcast %73 : vector<16x1xf32> to vector<16x64xf32>
    %75 = arith.addf %71, %74 : vector<16x64xf32>
    %cst_45 = arith.constant 0.000000e+00 : f32
    %76 = vector.broadcast %cst_45 : f32 to vector<16x64xf32>
    %77 = arith.maximumf %75, %76 : vector<16x64xf32>
    %78 = arith.addf %68, %77 : vector<16x64xf32>
    %79 = vector.extract_strided_slice %78 {offsets = [0, 0], sizes = [16, 32], strides = [1, 1]} : vector<16x64xf32> to vector<16x32xf32>
    %80 = vector.extract_strided_slice %78 {offsets = [0, 32], sizes = [16, 32], strides = [1, 1]} : vector<16x64xf32> to vector<16x32xf32>
    %81 = tpu.concatenate %79, %80 in 0 : vector<16x32xf32>, vector<16x32xf32> -> vector<32x32xf32>
    %c1_46 = arith.constant 1 : index
    %c0_47 = arith.constant 0 : index
    %c0_48 = arith.constant 0 : index
    %82 = vector.load %arg6[%c1_46, %c0_47, %c0_48] : memref<2x32x64xf32, #tpu.memory_space<vmem>>, vector<1x32x64xf32>
    %83 = vector.shape_cast %82 : vector<1x32x64xf32> to vector<32x64xf32>
    %cst_49 = arith.constant dense<0.000000e+00> : vector<32x64xf32>
    %84 = tpu.matmul %81, %83, %cst_49 {dimension_numbers = #tpu.dot_dimension_numbers<[1], [0], [0], [1], [0, 0, 1, 1], [], []>} : vector<32x32xf32>, vector<32x64xf32>, vector<32x64xf32> -> vector<32x64xf32>
    %c1_50 = arith.constant 1 : index
    %c0_51 = arith.constant 0 : index
    %c0_52 = arith.constant 0 : index
    %85 = vector.load %arg7[%c1_50, %c0_51, %c0_52] : memref<2x1x64xf32, #tpu.memory_space<vmem>>, vector<1x1x64xf32>
    %86 = vector.shape_cast %85 : vector<1x1x64xf32> to vector<1x64xf32>
    %87 = vector.broadcast %86 : vector<1x64xf32> to vector<32x64xf32>
    %88 = arith.addf %84, %87 : vector<32x64xf32>
    %cst_53 = arith.constant 0.000000e+00 : f32
    %89 = vector.broadcast %cst_53 : f32 to vector<32x64xf32>
    %90 = arith.maximumf %88, %89 : vector<32x64xf32>
    %c1_54 = arith.constant 1 : index
    %c0_55 = arith.constant 0 : index
    %c0_56 = arith.constant 0 : index
    %91 = vector.load %arg8[%c1_54, %c0_55, %c0_56] : memref<2x64x32xf32, #tpu.memory_space<vmem>>, vector<1x64x32xf32>
    %92 = vector.shape_cast %91 : vector<1x64x32xf32> to vector<64x32xf32>
    %cst_57 = arith.constant dense<0.000000e+00> : vector<32x32xf32>
    %93 = tpu.matmul %90, %92, %cst_57 {dimension_numbers = #tpu.dot_dimension_numbers<[1], [0], [0], [1], [0, 0, 1, 1], [], []>} : vector<32x64xf32>, vector<64x32xf32>, vector<32x32xf32> -> vector<32x32xf32>
    %c1_58 = arith.constant 1 : index
    %c0_59 = arith.constant 0 : index
    %c0_60 = arith.constant 0 : index
    %94 = vector.load %arg9[%c1_58, %c0_59, %c0_60] : memref<2x1x32xf32, #tpu.memory_space<vmem>>, vector<1x1x32xf32>
    %95 = vector.shape_cast %94 : vector<1x1x32xf32> to vector<1x32xf32>
    %96 = vector.broadcast %95 : vector<1x32xf32> to vector<32x32xf32>
    %97 = arith.addf %93, %96 : vector<32x32xf32>
    %98 = vector.extract_strided_slice %97 {offsets = [0, 0], sizes = [16, 32], strides = [1, 1]} : vector<32x32xf32> to vector<16x32xf32>
    %99 = vector.extract_strided_slice %97 {offsets = [16, 0], sizes = [16, 32], strides = [1, 1]} : vector<32x32xf32> to vector<16x32xf32>
    %100 = tpu.concatenate %98, %99 in 1 : vector<16x32xf32>, vector<16x32xf32> -> vector<16x64xf32>
    %101 = arith.addf %78, %100 : vector<16x64xf32>
    %c0_61 = arith.constant 0 : index
    %c0_62 = arith.constant 0 : index
    %102 = vector.load %arg10[%c0_61, %c0_62] : memref<8x16xf32, #tpu.memory_space<vmem>>, vector<8x16xf32>
    %cst_63 = arith.constant dense<0.000000e+00> : vector<8x64xf32>
    %103 = tpu.matmul %102, %101, %cst_63 {dimension_numbers = #tpu.dot_dimension_numbers<[1], [0], [0], [1], [0, 0, 1, 1], [], []>} : vector<8x16xf32>, vector<16x64xf32>, vector<8x64xf32> -> vector<8x64xf32>
    %c0_64 = arith.constant 0 : index
    %c0_65 = arith.constant 0 : index
    %104 = vector.load %arg11[%c0_64, %c0_65] : memref<8x1xf32, #tpu.memory_space<vmem>>, vector<8x1xf32>
    %105 = vector.broadcast %104 : vector<8x1xf32> to vector<8x64xf32>
    %106 = arith.addf %103, %105 : vector<8x64xf32>
    %107 = vector.broadcast %10 : vector<1x64xf32> to vector<8x64xf32>
    %108 = arith.subf %106, %107 : vector<8x64xf32>
    %109 = vector.broadcast %12 : vector<1x64xf32> to vector<8x64xf32>
    %110 = arith.mulf %108, %109 : vector<8x64xf32>
    %111 = vector.broadcast %29 : vector<1x64xf32> to vector<8x64xf32>
    %112 = arith.mulf %110, %111 : vector<8x64xf32>
    %113 = vector.broadcast %16 : vector<1x64xf32> to vector<8x64xf32>
    %114 = arith.addf %112, %113 : vector<8x64xf32>
    %115 = vector.extract_strided_slice %114 {offsets = [0, 0], sizes = [8, 32], strides = [1, 1]} : vector<8x64xf32> to vector<8x32xf32>
    %c0_66 = arith.constant 0 : index
    %c0_67 = arith.constant 0 : index
    %c0_68 = arith.constant 0 : index
    %116 = vector.load %arg12[%c0_66, %c0_67, %c0_68] : memref<2x8x32xf32, #tpu.memory_space<vmem>>, vector<1x8x32xf32>
    %117 = vector.shape_cast %116 : vector<1x8x32xf32> to vector<8x32xf32>
    %118 = vector.shape_cast %115 : vector<8x32xf32> to vector<1x8x32xf32>
    tpu.vector_store %arg12[%c0_66, %c0_67, %c0_68], %118 {strides = array<i32>} : memref<2x8x32xf32, #tpu.memory_space<vmem>>, vector<1x8x32xf32>,
    %119 = vector.extract_strided_slice %114 {offsets = [0, 32], sizes = [8, 32], strides = [1, 1]} : vector<8x64xf32> to vector<8x32xf32>
    %c1_69 = arith.constant 1 : index
    %c0_70 = arith.constant 0 : index
    %c0_71 = arith.constant 0 : index
    %120 = vector.load %arg12[%c1_69, %c0_70, %c0_71] : memref<2x8x32xf32, #tpu.memory_space<vmem>>, vector<1x8x32xf32>
    %121 = vector.shape_cast %120 : vector<1x8x32xf32> to vector<8x32xf32>
    %122 = vector.shape_cast %119 : vector<8x32xf32> to vector<1x8x32xf32>
    tpu.vector_store %arg12[%c1_69, %c0_70, %c0_71], %122 {strides = array<i32>} : memref<2x8x32xf32, #tpu.memory_space<vmem>>, vector<1x8x32xf32>,
    return
  }
}

</mosaic_0001>

<llo_original>
// kernel: tpu_custom_call.1
$region0: #{tpu_custom_call.1}
  #allocation0 [shape = 'u32[]', space=smem, size = 0x4, offset = 0x4, fixed_abs, tag = 'smem constant byte address 0x4 - core index']
  #allocation1 [shape = 'u32[144,128]{1,0:T(1,128)}', space=vmem, size = 0x12000, scoped, tag = 'internal scratch']
  %s0 = inlined_call_operand.vmem [shape: f32[2,32,16], index: 0, kind: input, shape index: {}]
  %s1 = inlined_call_operand.vmem [shape: f32[1,32], index: 1, kind: input, shape index: {}]
  %s2 = inlined_call_operand.vmem [shape: f32[1,32], index: 2, kind: input, shape index: {}]
  %s3 = inlined_call_operand.vmem [shape: f32[1,32], index: 3, kind: input, shape index: {}]
  %s4 = inlined_call_operand.vmem [shape: f32[2,16,16], index: 4, kind: input, shape index: {}]
  %s5 = inlined_call_operand.vmem [shape: f32[2,16,1], index: 5, kind: input, shape index: {}]
  %s6 = inlined_call_operand.vmem [shape: f32[2,32,64], index: 6, kind: input, shape index: {}]
  %s7 = inlined_call_operand.vmem [shape: f32[2,1,64], index: 7, kind: input, shape index: {}]
  %s8 = inlined_call_operand.vmem [shape: f32[2,64,32], index: 8, kind: input, shape index: {}]
  %s9 = inlined_call_operand.vmem [shape: f32[2,1,32], index: 9, kind: input, shape index: {}]
  %s10 = inlined_call_operand.vmem [shape: f32[8,16], index: 10, kind: input, shape index: {}]
  %s11 = inlined_call_operand.vmem [shape: f32[8,1], index: 11, kind: input, shape index: {}]
  %s12 = inlined_call_operand.hbm [shape: f32[2,8,32], index: 12, kind: output, shape index: {}]
  %s13 = sld [smem:[#allocation0]]
  $region58: #{tpu_custom_call.1} parent=0
    _
  %s15 = ssub.s32 1, %s13
  %s16 = scalar_select 0, %s15, %s13
  $region1: #{tpu_custom_call.1} parent=0
    #allocation2 [shape = 'u8[8192]{0}', space=vmem, size = 0x2000, scoped, tag = 'output window, operand 0, single buffered']
    #allocation3 [shape = 's32[1]{0}', space=sflag, size = 0x4, scoped, tag = 'scoped memory for tpu_custom_call.1']
    %17 = vsyncpa [#allocation3], 0
    // Predicated region
    $region2: #{tpu_custom_call.1} parent=1 // pred_check
      _
    $region3: #{tpu_custom_call.1} parent=1 // pred_check_branch
      %19 = sbr.rel (0) target = $region5
    $region4: #{tpu_custom_call.1} parent=1 // pred_region
      _
    $region5: #{tpu_custom_call.1} parent=1 // pred_fallthru
      _
    // Predicated region
    $region6: #{tpu_custom_call.1} parent=1 // pred_check
      _
    $region7: #{tpu_custom_call.1} parent=1 // pred_check_branch
      %21 = sbr.rel (0) target = $region9
    $region8: #{tpu_custom_call.1} parent=1 // pred_region
      _
    $region9: #{tpu_custom_call.1} parent=1 // pred_fallthru
      _
    // Predicated region
    $region10: #{tpu_custom_call.1} parent=1 // pred_check
      _
    $region11: #{tpu_custom_call.1} parent=1 // pred_check_branch
      %23 = sbr.rel (0) target = $region13
    $region12: #{tpu_custom_call.1} parent=1 // pred_region
      _
    $region13: #{tpu_custom_call.1} parent=1 // pred_fallthru
      _
    // Predicated region
    $region14: #{tpu_custom_call.1} parent=1 // pred_check
      _
    $region15: #{tpu_custom_call.1} parent=1 // pred_check_branch
      %25 = sbr.rel (0) target = $region17
    $region16: #{tpu_custom_call.1} parent=1 // pred_region
      _
    $region17: #{tpu_custom_call.1} parent=1 // pred_fallthru
      _
    // Predicated region
    $region18: #{tpu_custom_call.1} parent=1 // pred_check
      _
    $region19: #{tpu_custom_call.1} parent=1 // pred_check_branch
      %27 = sbr.rel (0) target = $region21
    $region20: #{tpu_custom_call.1} parent=1 // pred_region
      _
    $region21: #{tpu_custom_call.1} parent=1 // pred_fallthru
      _
    // Predicated region
    $region22: #{tpu_custom_call.1} parent=1 // pred_check
      _
    $region23: #{tpu_custom_call.1} parent=1 // pred_check_branch
      %29 = sbr.rel (0) target = $region25
    $region24: #{tpu_custom_call.1} parent=1 // pred_region
      _
    $region25: #{tpu_custom_call.1} parent=1 // pred_fallthru
      _
    // Predicated region
    $region26: #{tpu_custom_call.1} parent=1 // pred_check
      _
    $region27: #{tpu_custom_call.1} parent=1 // pred_check_branch
      %31 = sbr.rel (0) target = $region29
    $region28: #{tpu_custom_call.1} parent=1 // pred_region
      _
    $region29: #{tpu_custom_call.1} parent=1 // pred_fallthru
      _
    // Predicated region
    $region30: #{tpu_custom_call.1} parent=1 // pred_check
      _
    $region31: #{tpu_custom_call.1} parent=1 // pred_check_branch
      %33 = sbr.rel (0) target = $region33
    $region32: #{tpu_custom_call.1} parent=1 // pred_region
      _
    $region33: #{tpu_custom_call.1} parent=1 // pred_fallthru
      _
    // Predicated region
    $region34: #{tpu_custom_call.1} parent=1 // pred_check
      _
    $region35: #{tpu_custom_call.1} parent=1 // pred_check_branch
      %35 = sbr.rel (0) target = $region37
    $region36: #{tpu_custom_call.1} parent=1 // pred_region
      _
    $region37: #{tpu_custom_call.1} parent=1 // pred_fallthru
      _
    // Predicated region
    $region38: #{tpu_custom_call.1} parent=1 // pred_check
      _
    $region39: #{tpu_custom_call.1} parent=1 // pred_check_branch
      %37 = sbr.rel (0) target = $region41
    $region40: #{tpu_custom_call.1} parent=1 // pred_region
      _
    $region41: #{tpu_custom_call.1} parent=1 // pred_fallthru
      _
    // Predicated region
    $region42: #{tpu_custom_call.1} parent=1 // pred_check
      _
    $region43: #{tpu_custom_call.1} parent=1 // pred_check_branch
      %39 = sbr.rel (0) target = $region45
    $region44: #{tpu_custom_call.1} parent=1 // pred_region
      _
    $region45: #{tpu_custom_call.1} parent=1 // pred_fallthru
      _
    // Predicated region
    $region46: #{tpu_custom_call.1} parent=1 // pred_check
      _
    $region47: #{tpu_custom_call.1} parent=1 // pred_check_branch
      %41 = sbr.rel (0) target = $region49
    $region48: #{tpu_custom_call.1} parent=1 // pred_region
      _
    $region49: #{tpu_custom_call.1} parent=1 // pred_fallthru
      _
    %v42 = vld [vmem:[%s0] sm:$0xff]
    %v43 = vld [vmem:[%s0 + $0x8] sm:$0xff]
    %v44 = vld [vmem:[%s0 + $0x10] sm:$0xff]
    %v45 = vld [vmem:[%s0 + $0x18] sm:$0xff]
    %46 = vxpose.xlu0.b32.start [1/16] %v42, 128
    %47 = vxpose.xlu0.b32.cont [2/16] %v43, 128
    %48 = vxpose.xlu0.b32.cont [3/16] %v44, 128
    %49 = vxpose.xlu0.b32.cont [4/16] %v45, 128
    %50 = vxpose.xlu0.b32.cont [5/16] 0.0, 128
    %51 = vxpose.xlu0.b32.cont [6/16] 0.0, 128
    %52 = vxpose.xlu0.b32.cont [7/16] 0.0, 128
    %53 = vxpose.xlu0.b32.cont [8/16] 0.0, 128
    %54 = vxpose.xlu0.b32.cont [9/16] 0.0, 128
    %55 = vxpose.xlu0.b32.cont [10/16] 0.0, 128
    %56 = vxpose.xlu0.b32.cont [11/16] 0.0, 128
    %57 = vxpose.xlu0.b32.cont [12/16] 0.0, 128
    %58 = vxpose.xlu0.b32.cont [13/16] 0.0, 128
    %59 = vxpose.xlu0.b32.cont [14/16] 0.0, 128
    %60 = vxpose.xlu0.b32.cont [15/16] 0.0, 128
    %61 = vxpose.xlu0.b32.end [16/16] 0.0, 128
    %v62 = vpop.trf.xlu0
    %v63 = vpop.trf.xlu0
    %v64 = vpop.trf.xlu0
    %v65 = vpop.trf.xlu0
    %v66 = vpop.trf.xlu0
    %v67 = vpop.trf.xlu0
    %v68 = vpop.trf.xlu0
    %v69 = vpop.trf.xlu0
    %v70 = vpop.trf.xlu0
    %v71 = vpop.trf.xlu0
    %v72 = vpop.trf.xlu0
    %v73 = vpop.trf.xlu0
    %v74 = vpop.trf.xlu0
    %v75 = vpop.trf.xlu0
    %v76 = vpop.trf.xlu0
    %v77 = vpop.trf.xlu0
    %s78 = scalar_lea.vmem %s0, 32
    %v79 = vld [vmem:[%s78] sm:$0xff]
    %v80 = vld [vmem:[%s78 + $0x8] sm:$0xff]
    %v81 = vld [vmem:[%s78 + $0x10] sm:$0xff]
    %v82 = vld [vmem:[%s78 + $0x18] sm:$0xff]
    %83 = vxpose.xlu0.b32.start [1/16] %v79, 128
    %84 = vxpose.xlu0.b32.cont [2/16] %v80, 128
    %85 = vxpose.xlu0.b32.cont [3/16] %v81, 128
    %86 = vxpose.xlu0.b32.cont [4/16] %v82, 128
    %87 = vxpose.xlu0.b32.cont [5/16] 0.0, 128
    %88 = vxpose.xlu0.b32.cont [6/16] 0.0, 128
    %89 = vxpose.xlu0.b32.cont [7/16] 0.0, 128
    %90 = vxpose.xlu0.b32.cont [8/16] 0.0, 128
    %91 = vxpose.xlu0.b32.cont [9/16] 0.0, 128
    %92 = vxpose.xlu0.b32.cont [10/16] 0.0, 128
    %93 = vxpose.xlu0.b32.cont [11/16] 0.0, 128
    %94 = vxpose.xlu0.b32.cont [12/16] 0.0, 128
    %95 = vxpose.xlu0.b32.cont [13/16] 0.0, 128
    %96 = vxpose.xlu0.b32.cont [14/16] 0.0, 128
    %97 = vxpose.xlu0.b32.cont [15/16] 0.0, 128
    %98 = vxpose.xlu0.b32.end [16/16] 0.0, 128
    %v99 = vpop.trf.xlu0
    %v100 = vpop.trf.xlu0
    %v101 = vpop.trf.xlu0
    %v102 = vpop.trf.xlu0
    %v103 = vpop.trf.xlu0
    %v104 = vpop.trf.xlu0
    %v105 = vpop.trf.xlu0
    %v106 = vpop.trf.xlu0
    %v107 = vpop.trf.xlu0
    %v108 = vpop.trf.xlu0
    %v109 = vpop.trf.xlu0
    %v110 = vpop.trf.xlu0
    %v111 = vpop.trf.xlu0
    %v112 = vpop.trf.xlu0
    %v113 = vpop.trf.xlu0
    %v114 = vpop.trf.xlu0
    %117 = vrot.lane.b32.xlu0 %v99, 32
    %v118 = vpop.permute.xlu0 %117
    %119 = vrot.lane.b32.xlu0 %v100, 32
    %v120 = vpop.permute.xlu0 %119
    %vm123 = vcmask 261120
    %v124 = vsel %vm123, %v62, %v118
    %v125 = vsel %vm123, %v63, %v120
    %v126 = vld [vmem:[%s1] sm:$0x1]
    %v128 = vlaneseq
    %v129 = vshrl.u32 %v128, 7
    %v130 = vsub.s32 0, %v129
    %v131 = vrot.slane %v126, %v130
    %132 = vrot.lane.b32.xlu0 %v131, 32
    %v133 = vpop.permute.xlu0 %132
    %v135 = vsel %vm123, %v126, %v133
    %v136 = vld [vmem:[%s2] sm:$0x1]
    %v138 = vlaneseq
    %v139 = vshrl.u32 %v138, 7
    %v140 = vsub.s32 0, %v139
    %v141 = vrot.slane %v136, %v140
    %142 = vrot.lane.b32.xlu0 %v141, 32
    %v143 = vpop.permute.xlu0 %142
    %v145 = vsel %vm123, %v136, %v143
    %v146 = vld [vmem:[%s3] sm:$0x1]
    %v148 = vlaneseq
    %v149 = vshrl.u32 %v148, 7
    %v150 = vsub.s32 0, %v149
    %v151 = vrot.slane %v146, %v150
    %152 = vrot.lane.b32.xlu0 %v151, 32
    %v153 = vpop.permute.xlu0 %152
    %v155 = vsel %vm123, %v146, %v153
    %vm156 = vcmask 523264
    %v157 = vsel %vm156, %v124, 0.0
    %v158 = vsel %vm156, %v125, 0.0
    %v159 = vadd.f32 %v157, %v158
    %v160 = vrot.slane %v159, 4
    %v161 = vadd.f32 %v159, %v160
    %v162 = vrot.slane %v161, 2
    %v163 = vadd.f32 %v161, %v162
    %v164 = vrot.slane %v163, 1
    %v165 = vadd.f32 %v163, %v164
    %v166 = vrcp.pop 16.0
    %v167 = vmul.f32 %v165, %v166
    %v168 = vsub.f32 %v124, %v167
    %v169 = vsub.f32 %v125, %v167
    %v170 = vmul.f32 %v168, %v168
    %v171 = vmul.f32 %v169, %v169
    %v172 = vsel %vm156, %v170, 0.0
    %v173 = vsel %vm156, %v171, 0.0
    %v174 = vadd.f32 %v172, %v173
    %v175 = vrot.slane %v174, 4
    %v176 = vadd.f32 %v174, %v175
    %v177 = vrot.slane %v176, 2
    %v178 = vadd.f32 %v176, %v177
    %v179 = vrot.slane %v178, 1
    %v180 = vadd.f32 %v178, %v179
    %v181 = vmul.f32 %v180, 0.06666667
    %v182 = vadd.f32 %v181, 1e-08
    %v183 = vrsqrt.pop %v182
    %v184 = vmul.f32 %v182, %v183
    %v185 = vmul.f32 %v168, %v183
    %v186 = vmul.f32 %v169, %v183
    %v187 = vlaneseq
    %v188 = vshrl.u32 %v187, 7
    %v189 = vsub.s32 0, %v188
    %v190 = vrot.slane %v135, %v189
    %v191 = vmul.f32 %v185, %v190
    %v192 = vmul.f32 %v186, %v190
    %v193 = vlaneseq
    %v194 = vshrl.u32 %v193, 7
    %v195 = vsub.s32 0, %v194
    %v196 = vrot.slane %v145, %v195
    %v197 = vadd.f32 %v191, %v196
    %v198 = vadd.f32 %v192, %v196
    %v199 = vld [vmem:[%s4] sm:$0xff]
    %v200 = vld [vmem:[%s4 + $0x8] sm:$0xff]
    %v201 = vld [vmem:[%s5] sm:$0xff]
    %v202 = vld [vmem:[%s5 + $0x8] sm:$0xff]
    %204 = vset.pattern.permute.xlu0 0
    %205 = vperm.xlu0 %204, %v201
    %v206 = vpop.permute.xlu0 %205
    %209 = vset.pattern.permute.xlu0 0
    %210 = vperm.xlu0 %209, %v202
    %v211 = vpop.permute.xlu0 %210
    %vm213 = vcmask 130048
    %v215 = vsel %vm213, %v199, 0
    %v218 = vsel %vm213, %v200, 0
    %220 = vmatprep.subr.mxu0 0.0
    %221 = vmatpush1.msra.mxu0 %v197
    %222 = vmatprep.subr.mxu0 0.0
    %223 = vmatpush1.msra.mxu0 %v198
    %224 = vmatprep.subr.mxu0 0.0
    %225 = vmatpush1.msra.mxu0 0.0
    %226 = vmatprep.subr.mxu0 0.0
    %227 = vmatpush1.msra.mxu0 0.0
    %228 = vmatprep.subr.mxu0 0.0
    %229 = vmatpush1.msra.mxu0 0.0
    %230 = vmatprep.subr.mxu0 0.0
    %231 = vmatpush1.msra.mxu0 0.0
    %232 = vmatprep.subr.mxu0 0.0
    %233 = vmatpush1.msra.mxu0 0.0
    %234 = vmatprep.subr.mxu0 0.0
    %235 = vmatpush1.msra.mxu0 0.0
    %236 = vmatprep.subr.mxu0 0.0
    %237 = vmatpush1.msra.mxu0 0.0
    %238 = vmatprep.subr.mxu0 0.0
    %239 = vmatpush1.msra.mxu0 0.0
    %240 = vmatprep.subr.mxu0 0.0
    %241 = vmatpush1.msra.mxu0 0.0
    %242 = vmatprep.subr.mxu0 0.0
    %243 = vmatpush1.msra.mxu0 0.0
    %244 = vmatprep.subr.mxu0 0.0
    %245 = vmatpush1.msra.mxu0 0.0
    %246 = vmatprep.subr.mxu0 0.0
    %247 = vmatpush1.msra.mxu0 0.0
    %248 = vmatprep.subr.mxu0 0.0
    %249 = vmatpush1.msra.mxu0 0.0
    %250 = vmatprep.subr.mxu0 0.0
    %251 = vmatpush1.msra.mxu0 0.0
    %252 = vmatprep.subr.mxu0 0.0
    %253 = vmatpush1.msra.mxu0 0.0
    %254 = vmatprep.subr.mxu0 0.0
    %255 = vmatpush1.msra.mxu0 0.0
    %256 = vmatprep.subr.mxu0 0.0
    %257 = vmatpush1.msra.mxu0 0.0
    %258 = vmatprep.subr.mxu0 0.0
    %259 = vmatpush1.msra.mxu0 0.0
    %260 = vmatprep.subr.mxu0 0.0
    %261 = vmatpush1.msra.mxu0 0.0
    %262 = vmatprep.subr.mxu0 0.0
    %263 = vmatpush1.msra.mxu0 0.0
    %264 = vmatprep.subr.mxu0 0.0
    %265 = vmatpush1.msra.mxu0 0.0
    %266 = vmatprep.subr.mxu0 0.0
    %267 = vmatpush1.msra.mxu0 0.0
    %268 = vmatprep.subr.mxu0 0.0
    %269 = vmatpush1.msra.mxu0 0.0
    %270 = vmatprep.subr.mxu0 0.0
    %271 = vmatpush1.msra.mxu0 0.0
    %272 = vmatprep.subr.mxu0 0.0
    %273 = vmatpush1.msra.mxu0 0.0
    %274 = vmatprep.subr.mxu0 0.0
    %275 = vmatpush1.msra.mxu0 0.0
    %276 = vmatprep.subr.mxu0 0.0
    %277 = vmatpush1.msra.mxu0 0.0
    %278 = vmatprep.subr.mxu0 0.0
    %279 = vmatpush1.msra.mxu0 0.0
    %280 = vmatprep.subr.mxu0 0.0
    %281 = vmatpush1.msra.mxu0 0.0
    %282 = vmatprep.subr.mxu0 0.0
    %283 = vmatpush1.msra.mxu0 0.0
    %284 = vmatprep.mubr.f32.mxu0 0.0
    %285 = vmatmul.mubr.f32.gmra.mrb[0].mxu0 %v215
    %v286 = vpop.f32.mrb[0].mxu0
    %v287 = vadd.f32 %v206, %v286
    %v288 = vpop.f32.mrb[0].mxu0
    %289 = vmatprep.mubr.f32.mxu0 0.0
    %290 = vmatmul.mubr.f32.gmra.mrb[0].mxu0 %v218
    %v291 = vpop.f32.mrb[0].mxu0
    %v292 = vadd.f32 %v211, %v291
    %v293 = vpop.f32.mrb[0].mxu0
    %294 = vdwg.mxu0
    %v295 = vmax.f32 %v287, 0.0
    %v296 = vmax.f32 %v292, 0.0
    %v297 = vadd.f32 %v197, %v295
    %v298 = vadd.f32 %v198, %v296
    %301 = vrot.lane.b32.xlu0 %v297, 96
    %v302 = vpop.permute.xlu0 %301
    %303 = vrot.lane.b32.xlu0 %v298, 96
    %v304 = vpop.permute.xlu0 %303
    %v305 = vld [vmem:[%s6] sm:$0xff]
    %v306 = vld [vmem:[%s6 + $0x8] sm:$0xff]
    %v307 = vld [vmem:[%s6 + $0x10] sm:$0xff]
    %v308 = vld [vmem:[%s6 + $0x18] sm:$0xff]
    %v309 = vld [vmem:[%s7] sm:$0x1]
    %v311 = vlaneseq
    %v312 = vshrl.u32 %v311, 7
    %v313 = vsub.s32 0, %v312
    %v314 = vrot.slane %v309, %v313
    %v316 = vsel %vm123, %v297, 0
    %v318 = vsel %vm123, %v298, 0
    %v320 = vsel %vm123, %v302, 0
    %v322 = vsel %vm123, %v304, 0
    %324 = vmatprep.subr.mxu0 0.0
    %325 = vmatpush1.msra.mxu0 %v305
    %326 = vmatprep.subr.mxu0 0.0
    %327 = vmatpush1.msra.mxu0 %v306
    %328 = vmatprep.subr.mxu0 0.0
    %329 = vmatpush1.msra.mxu0 %v307
    %330 = vmatprep.subr.mxu0 0.0
    %331 = vmatpush1.msra.mxu0 %v308
    %332 = vmatprep.subr.mxu0 0.0
    %333 = vmatpush1.msra.mxu0 0.0
    %334 = vmatprep.subr.mxu0 0.0
    %335 = vmatpush1.msra.mxu0 0.0
    %336 = vmatprep.subr.mxu0 0.0
    %337 = vmatpush1.msra.mxu0 0.0
    %338 = vmatprep.subr.mxu0 0.0
    %339 = vmatpush1.msra.mxu0 0.0
    %340 = vmatprep.subr.mxu0 0.0
    %341 = vmatpush1.msra.mxu0 0.0
    %342 = vmatprep.subr.mxu0 0.0
    %343 = vmatpush1.msra.mxu0 0.0
    %344 = vmatprep.subr.mxu0 0.0
    %345 = vmatpush1.msra.mxu0 0.0
    %346 = vmatprep.subr.mxu0 0.0
    %347 = vmatpush1.msra.mxu0 0.0
    %348 = vmatprep.subr.mxu0 0.0
    %349 = vmatpush1.msra.mxu0 0.0
    %350 = vmatprep.subr.mxu0 0.0
    %351 = vmatpush1.msra.mxu0 0.0
    %352 = vmatprep.subr.mxu0 0.0
    %353 = vmatpush1.msra.mxu0 0.0
    %354 = vmatprep.subr.mxu0 0.0
    %355 = vmatpush1.msra.mxu0 0.0
    %356 = vmatprep.subr.mxu0 0.0
    %357 = vmatpush1.msra.mxu0 0.0
    %358 = vmatprep.subr.mxu0 0.0
    %359 = vmatpush1.msra.mxu0 0.0
    %360 = vmatprep.subr.mxu0 0.0
    %361 = vmatpush1.msra.mxu0 0.0
    %362 = vmatprep.subr.mxu0 0.0
    %363 = vmatpush1.msra.mxu0 0.0
    %364 = vmatprep.subr.mxu0 0.0
    %365 = vmatpush1.msra.mxu0 0.0
    %366 = vmatprep.subr.mxu0 0.0
    %367 = vmatpush1.msra.mxu0 0.0
    %368 = vmatprep.subr.mxu0 0.0
    %369 = vmatpush1.msra.mxu0 0.0
    %370 = vmatprep.subr.mxu0 0.0
    %371 = vmatpush1.msra.mxu0 0.0
    %372 = vmatprep.subr.mxu0 0.0
    %373 = vmatpush1.msra.mxu0 0.0
    %374 = vmatprep.subr.mxu0 0.0
    %375 = vmatpush1.msra.mxu0 0.0
    %376 = vmatprep.subr.mxu0 0.0
    %377 = vmatpush1.msra.mxu0 0.0
    %378 = vmatprep.subr.mxu0 0.0
    %379 = vmatpush1.msra.mxu0 0.0
    %380 = vmatprep.subr.mxu0 0.0
    %381 = vmatpush1.msra.mxu0 0.0
    %382 = vmatprep.subr.mxu0 0.0
    %383 = vmatpush1.msra.mxu0 0.0
    %384 = vmatprep.subr.mxu0 0.0
    %385 = vmatpush1.msra.mxu0 0.0
    %386 = vmatprep.subr.mxu0 0.0
    %387 = vmatpush1.msra.mxu0 0.0
    %388 = vmatprep.mubr.f32.mxu0 0.0
    %389 = vmatmul.mubr.f32.gmra.mrb[0].mxu0 %v316
    %v390 = vpop.f32.mrb[0].mxu0
    %v391 = vadd.f32 %v314, %v390
    %v392 = vpop.f32.mrb[0].mxu0
    %393 = vmatprep.mubr.f32.mxu0 0.0
    %394 = vmatmul.mubr.f32.gmra.mrb[0].mxu0 %v318
    %v395 = vpop.f32.mrb[0].mxu0
    %v396 = vadd.f32 %v314, %v395
    %v397 = vpop.f32.mrb[0].mxu0
    %398 = vmatprep.mubr.f32.mxu0 0.0
    %399 = vmatmul.mubr.f32.gmra.mrb[0].mxu0 %v320
    %v400 = vpop.f32.mrb[0].mxu0
    %v401 = vadd.f32 %v314, %v400
    %v402 = vpop.f32.mrb[0].mxu0
    %403 = vmatprep.mubr.f32.mxu0 0.0
    %404 = vmatmul.mubr.f32.gmra.mrb[0].mxu0 %v322
    %v405 = vpop.f32.mrb[0].mxu0
    %v406 = vadd.f32 %v314, %v405
    %v407 = vpop.f32.mrb[0].mxu0
    %408 = vdwg.mxu0
    %v409 = vmax.f32 %v391, 0.0
    %v410 = vmax.f32 %v396, 0.0
    %v411 = vmax.f32 %v401, 0.0
    %v412 = vmax.f32 %v406, 0.0
    %v413 = vld [vmem:[%s8] sm:$0xff]
    %v414 = vld [vmem:[%s8 + $0x8] sm:$0xff]
    %v415 = vld [vmem:[%s8 + $0x10] sm:$0xff]
    %v416 = vld [vmem:[%s8 + $0x18] sm:$0xff]
    %v417 = vld [vmem:[%s8 + $0x20] sm:$0xff]
    %v418 = vld [vmem:[%s8 + $0x28] sm:$0xff]
    %v419 = vld [vmem:[%s8 + $0x30] sm:$0xff]
    %v420 = vld [vmem:[%s8 + $0x38] sm:$0xff]
    %v421 = vld [vmem:[%s9] sm:$0x1]
    %v423 = vlaneseq
    %v424 = vshrl.u32 %v423, 7
    %v425 = vsub.s32 0, %v424
    %v426 = vrot.slane %v421, %v425
    %v429 = vsel %vm156, %v409, 0
    %v432 = vsel %vm156, %v410, 0
    %v435 = vsel %vm156, %v411, 0
    %v438 = vsel %vm156, %v412, 0
    %440 = vmatprep.subr.mxu0 0.0
    %441 = vmatpush1.msra.mxu0 %v413
    %442 = vmatprep.subr.mxu0 0.0
    %443 = vmatpush1.msra.mxu0 %v414
    %444 = vmatprep.subr.mxu0 0.0
    %445 = vmatpush1.msra.mxu0 %v415
    %446 = vmatprep.subr.mxu0 0.0
    %447 = vmatpush1.msra.mxu0 %v416
    %448 = vmatprep.subr.mxu0 0.0
    %449 = vmatpush1.msra.mxu0 %v417
    %450 = vmatprep.subr.mxu0 0.0
    %451 = vmatpush1.msra.mxu0 %v418
    %452 = vmatprep.subr.mxu0 0.0
    %453 = vmatpush1.msra.mxu0 %v419
    %454 = vmatprep.subr.mxu0 0.0
    %455 = vmatpush1.msra.mxu0 %v420
    %456 = vmatprep.subr.mxu0 0.0
    %457 = vmatpush1.msra.mxu0 0.0
    %458 = vmatprep.subr.mxu0 0.0
    %459 = vmatpush1.msra.mxu0 0.0
    %460 = vmatprep.subr.mxu0 0.0
    %461 = vmatpush1.msra.mxu0 0.0
    %462 = vmatprep.subr.mxu0 0.0
    %463 = vmatpush1.msra.mxu0 0.0
    %464 = vmatprep.subr.mxu0 0.0
    %465 = vmatpush1.msra.mxu0 0.0
    %466 = vmatprep.subr.mxu0 0.0
    %467 = vmatpush1.msra.mxu0 0.0
    %468 = vmatprep.subr.mxu0 0.0
    %469 = vmatpush1.msra.mxu0 0.0
    %470 = vmatprep.subr.mxu0 0.0
    %471 = vmatpush1.msra.mxu0 0.0
    %472 = vmatprep.subr.mxu0 0.0
    %473 = vmatpush1.msra.mxu0 0.0
    %474 = vmatprep.subr.mxu0 0.0
    %475 = vmatpush1.msra.mxu0 0.0
    %476 = vmatprep.subr.mxu0 0.0
    %477 = vmatpush1.msra.mxu0 0.0
    %478 = vmatprep.subr.mxu0 0.0
    %479 = vmatpush1.msra.mxu0 0.0
    %480 = vmatprep.subr.mxu0 0.0
    %481 = vmatpush1.msra.mxu0 0.0
    %482 = vmatprep.subr.mxu0 0.0
    %483 = vmatpush1.msra.mxu0 0.0
    %484 = vmatprep.subr.mxu0 0.0
    %485 = vmatpush1.msra.mxu0 0.0
    %486 = vmatprep.subr.mxu0 0.0
    %487 = vmatpush1.msra.mxu0 0.0
    %488 = vmatprep.subr.mxu0 0.0
    %489 = vmatpush1.msra.mxu0 0.0
    %490 = vmatprep.subr.mxu0 0.0
    %491 = vmatpush1.msra.mxu0 0.0
    %492 = vmatprep.subr.mxu0 0.0
    %493 = vmatpush1.msra.mxu0 0.0
    %494 = vmatprep.subr.mxu0 0.0
    %495 = vmatpush1.msra.mxu0 0.0
    %496 = vmatprep.subr.mxu0 0.0
    %497 = vmatpush1.msra.mxu0 0.0
    %498 = vmatprep.subr.mxu0 0.0
    %499 = vmatpush1.msra.mxu0 0.0
    %500 = vmatprep.subr.mxu0 0.0
    %501 = vmatpush1.msra.mxu0 0.0
    %502 = vmatprep.subr.mxu0 0.0
    %503 = vmatpush1.msra.mxu0 0.0
    %504 = vmatprep.mubr.f32.mxu0 0.0
    %505 = vmatmul.mubr.f32.gmra.mrb[0].mxu0 %v429
    %v506 = vpop.f32.mrb[0].mxu0
    %v507 = vadd.f32 %v426, %v506
    %v508 = vpop.f32.mrb[0].mxu0
    %509 = vmatprep.mubr.f32.mxu0 0.0
    %510 = vmatmul.mubr.f32.gmra.mrb[0].mxu0 %v432
    %v511 = vpop.f32.mrb[0].mxu0
    %v512 = vadd.f32 %v426, %v511
    %v513 = vpop.f32.mrb[0].mxu0
    %514 = vmatprep.mubr.f32.mxu0 0.0
    %515 = vmatmul.mubr.f32.gmra.mrb[0].mxu0 %v435
    %v516 = vpop.f32.mrb[0].mxu0
    %v517 = vadd.f32 %v426, %v516
    %v518 = vpop.f32.mrb[0].mxu0
    %519 = vmatprep.mubr.f32.mxu0 0.0
    %520 = vmatmul.mubr.f32.gmra.mrb[0].mxu0 %v438
    %v521 = vpop.f32.mrb[0].mxu0
    %v522 = vadd.f32 %v426, %v521
    %v523 = vpop.f32.mrb[0].mxu0
    %524 = vdwg.mxu0
    %527 = vrot.lane.b32.xlu0 %v517, 32
    %v528 = vpop.permute.xlu0 %527
    %529 = vrot.lane.b32.xlu0 %v522, 32
    %v530 = vpop.permute.xlu0 %529
    %v533 = vsel %vm123, %v507, %v528
    %v534 = vsel %vm123, %v512, %v530
    %v535 = vadd.f32 %v297, %v533
    %v536 = vadd.f32 %v298, %v534
    %s537 = scalar_lea.vmem %s4, 16
    %v538 = vld [vmem:[%s537] sm:$0xff]
    %v539 = vld [vmem:[%s537 + $0x8] sm:$0xff]
    %s540 = scalar_lea.vmem %s5, 16
    %v541 = vld [vmem:[%s540] sm:$0xff]
    %v542 = vld [vmem:[%s540 + $0x8] sm:$0xff]
    %544 = vset.pattern.permute.xlu0 0
    %545 = vperm.xlu0 %544, %v541
    %v546 = vpop.permute.xlu0 %545
    %549 = vset.pattern.permute.xlu0 0
    %550 = vperm.xlu0 %549, %v542
    %v551 = vpop.permute.xlu0 %550
    %v554 = vsel %vm213, %v538, 0
    %v557 = vsel %vm213, %v539, 0
    %559 = vmatprep.subr.mxu0 0.0
    %560 = vmatpush1.msra.mxu0 %v535
    %561 = vmatprep.subr.mxu0 0.0
    %562 = vmatpush1.msra.mxu0 %v536
    %563 = vmatprep.subr.mxu0 0.0
    %564 = vmatpush1.msra.mxu0 0.0
    %565 = vmatprep.subr.mxu0 0.0
    %566 = vmatpush1.msra.mxu0 0.0
    %567 = vmatprep.subr.mxu0 0.0
    %568 = vmatpush1.msra.mxu0 0.0
    %569 = vmatprep.subr.mxu0 0.0
    %570 = vmatpush1.msra.mxu0 0.0
    %571 = vmatprep.subr.mxu0 0.0
    %572 = vmatpush1.msra.mxu0 0.0
    %573 = vmatprep.subr.mxu0 0.0
    %574 = vmatpush1.msra.mxu0 0.0
    %575 = vmatprep.subr.mxu0 0.0
    %576 = vmatpush1.msra.mxu0 0.0
    %577 = vmatprep.subr.mxu0 0.0
    %578 = vmatpush1.msra.mxu0 0.0
    %579 = vmatprep.subr.mxu0 0.0
    %580 = vmatpush1.msra.mxu0 0.0
    %581 = vmatprep.subr.mxu0 0.0
    %582 = vmatpush1.msra.mxu0 0.0
    %583 = vmatprep.subr.mxu0 0.0
    %584 = vmatpush1.msra.mxu0 0.0
    %585 = vmatprep.subr.mxu0 0.0
    %586 = vmatpush1.msra.mxu0 0.0
    %587 = vmatprep.subr.mxu0 0.0
    %588 = vmatpush1.msra.mxu0 0.0
    %589 = vmatprep.subr.mxu0 0.0
    %590 = vmatpush1.msra.mxu0 0.0
    %591 = vmatprep.subr.mxu0 0.0
    %592 = vmatpush1.msra.mxu0 0.0
    %593 = vmatprep.subr.mxu0 0.0
    %594 = vmatpush1.msra.mxu0 0.0
    %595 = vmatprep.subr.mxu0 0.0
    %596 = vmatpush1.msra.mxu0 0.0
    %597 = vmatprep.subr.mxu0 0.0
    %598 = vmatpush1.msra.mxu0 0.0
    %599 = vmatprep.subr.mxu0 0.0
    %600 = vmatpush1.msra.mxu0 0.0
    %601 = vmatprep.subr.mxu0 0.0
    %602 = vmatpush1.msra.mxu0 0.0
    %603 = vmatprep.subr.mxu0 0.0
    %604 = vmatpush1.msra.mxu0 0.0
    %605 = vmatprep.subr.mxu0 0.0
    %606 = vmatpush1.msra.mxu0 0.0
    %607 = vmatprep.subr.mxu0 0.0
    %608 = vmatpush1.msra.mxu0 0.0
    %609 = vmatprep.subr.mxu0 0.0
    %610 = vmatpush1.msra.mxu0 0.0
    %611 = vmatprep.subr.mxu0 0.0
    %612 = vmatpush1.msra.mxu0 0.0
    %613 = vmatprep.subr.mxu0 0.0
    %614 = vmatpush1.msra.mxu0 0.0
    %615 = vmatprep.subr.mxu0 0.0
    %616 = vmatpush1.msra.mxu0 0.0
    %617 = vmatprep.subr.mxu0 0.0
    %618 = vmatpush1.msra.mxu0 0.0
    %619 = vmatprep.subr.mxu0 0.0
    %620 = vmatpush1.msra.mxu0 0.0
    %621 = vmatprep.subr.mxu0 0.0
    %622 = vmatpush1.msra.mxu0 0.0
    %623 = vmatprep.mubr.f32.mxu0 0.0
    %624 = vmatmul.mubr.f32.gmra.mrb[0].mxu0 %v554
    %v625 = vpop.f32.mrb[0].mxu0
    %v626 = vadd.f32 %v546, %v625
    %v627 = vpop.f32.mrb[0].mxu0
    %628 = vmatprep.mubr.f32.mxu0 0.0
    %629 = vmatmul.mubr.f32.gmra.mrb[0].mxu0 %v557
    %v630 = vpop.f32.mrb[0].mxu0
    %v631 = vadd.f32 %v551, %v630
    %v632 = vpop.f32.mrb[0].mxu0
    %633 = vdwg.mxu0
    %v634 = vmax.f32 %v626, 0.0
    %v635 = vmax.f32 %v631, 0.0
    %v636 = vadd.f32 %v535, %v634
    %v637 = vadd.f32 %v536, %v635
    %640 = vrot.lane.b32.xlu0 %v636, 96
    %v641 = vpop.permute.xlu0 %640
    %642 = vrot.lane.b32.xlu0 %v637, 96
    %v643 = vpop.permute.xlu0 %642
    %s644 = scalar_lea.vmem %s6, 32
    %v645 = vld [vmem:[%s644] sm:$0xff]
    %v646 = vld [vmem:[%s644 + $0x8] sm:$0xff]
    %v647 = vld [vmem:[%s644 + $0x10] sm:$0xff]
    %v648 = vld [vmem:[%s644 + $0x18] sm:$0xff]
    %s649 = scalar_lea.vmem %s7, 1
    %v650 = vld [vmem:[%s649] sm:$0x1]
    %v652 = vlaneseq
    %v653 = vshrl.u32 %v652, 7
    %v654 = vsub.s32 0, %v653
    %v655 = vrot.slane %v650, %v654
    %v657 = vsel %vm123, %v636, 0
    %v659 = vsel %vm123, %v637, 0
    %v661 = vsel %vm123, %v641, 0
    %v663 = vsel %vm123, %v643, 0
    %665 = vmatprep.subr.mxu0 0.0
    %666 = vmatpush1.msra.mxu0 %v645
    %667 = vmatprep.subr.mxu0 0.0
    %668 = vmatpush1.msra.mxu0 %v646
    %669 = vmatprep.subr.mxu0 0.0
    %670 = vmatpush1.msra.mxu0 %v647
    %671 = vmatprep.subr.mxu0 0.0
    %672 = vmatpush1.msra.mxu0 %v648
    %673 = vmatprep.subr.mxu0 0.0
    %674 = vmatpush1.msra.mxu0 0.0
    %675 = vmatprep.subr.mxu0 0.0
    %676 = vmatpush1.msra.mxu0 0.0
    %677 = vmatprep.subr.mxu0 0.0
    %678 = vmatpush1.msra.mxu0 0.0
    %679 = vmatprep.subr.mxu0 0.0
    %680 = vmatpush1.msra.mxu0 0.0
    %681 = vmatprep.subr.mxu0 0.0
    %682 = vmatpush1.msra.mxu0 0.0
    %683 = vmatprep.subr.mxu0 0.0
    %684 = vmatpush1.msra.mxu0 0.0
    %685 = vmatprep.subr.mxu0 0.0
    %686 = vmatpush1.msra.mxu0 0.0
    %687 = vmatprep.subr.mxu0 0.0
    %688 = vmatpush1.msra.mxu0 0.0
    %689 = vmatprep.subr.mxu0 0.0
    %690 = vmatpush1.msra.mxu0 0.0
    %691 = vmatprep.subr.mxu0 0.0
    %692 = vmatpush1.msra.mxu0 0.0
    %693 = vmatprep.subr.mxu0 0.0
    %694 = vmatpush1.msra.mxu0 0.0
    %695 = vmatprep.subr.mxu0 0.0
    %696 = vmatpush1.msra.mxu0 0.0
    %697 = vmatprep.subr.mxu0 0.0
    %698 = vmatpush1.msra.mxu0 0.0
    %699 = vmatprep.subr.mxu0 0.0
    %700 = vmatpush1.msra.mxu0 0.0
    %701 = vmatprep.subr.mxu0 0.0
    %702 = vmatpush1.msra.mxu0 0.0
    %703 = vmatprep.subr.mxu0 0.0
    %704 = vmatpush1.msra.mxu0 0.0
    %705 = vmatprep.subr.mxu0 0.0
    %706 = vmatpush1.msra.mxu0 0.0
    %707 = vmatprep.subr.mxu0 0.0
    %708 = vmatpush1.msra.mxu0 0.0
    %709 = vmatprep.subr.mxu0 0.0
    %710 = vmatpush1.msra.mxu0 0.0
    %711 = vmatprep.subr.mxu0 0.0
    %712 = vmatpush1.msra.mxu0 0.0
    %713 = vmatprep.subr.mxu0 0.0
    %714 = vmatpush1.msra.mxu0 0.0
    %715 = vmatprep.subr.mxu0 0.0
    %716 = vmatpush1.msra.mxu0 0.0
    %717 = vmatprep.subr.mxu0 0.0
    %718 = vmatpush1.msra.mxu0 0.0
    %719 = vmatprep.subr.mxu0 0.0
    %720 = vmatpush1.msra.mxu0 0.0
    %721 = vmatprep.subr.mxu0 0.0
    %722 = vmatpush1.msra.mxu0 0.0
    %723 = vmatprep.subr.mxu0 0.0
    %724 = vmatpush1.msra.mxu0 0.0
    %725 = vmatprep.subr.mxu0 0.0
    %726 = vmatpush1.msra.mxu0 0.0
    %727 = vmatprep.subr.mxu0 0.0
    %728 = vmatpush1.msra.mxu0 0.0
    %729 = vmatprep.mubr.f32.mxu0 0.0
    %730 = vmatmul.mubr.f32.gmra.mrb[0].mxu0 %v657
    %v731 = vpop.f32.mrb[0].mxu0
    %v732 = vadd.f32 %v655, %v731
    %v733 = vpop.f32.mrb[0].mxu0
    %734 = vmatprep.mubr.f32.mxu0 0.0
    %735 = vmatmul.mubr.f32.gmra.mrb[0].mxu0 %v659
    %v736 = vpop.f32.mrb[0].mxu0
    %v737 = vadd.f32 %v655, %v736
    %v738 = vpop.f32.mrb[0].mxu0
    %739 = vmatprep.mubr.f32.mxu0 0.0
    %740 = vmatmul.mubr.f32.gmra.mrb[0].mxu0 %v661
    %v741 = vpop.f32.mrb[0].mxu0
    %v742 = vadd.f32 %v655, %v741
    %v743 = vpop.f32.mrb[0].mxu0
    %744 = vmatprep.mubr.f32.mxu0 0.0
    %745 = vmatmul.mubr.f32.gmra.mrb[0].mxu0 %v663
    %v746 = vpop.f32.mrb[0].mxu0
    %v747 = vadd.f32 %v655, %v746
    %v748 = vpop.f32.mrb[0].mxu0
    %749 = vdwg.mxu0
    %v750 = vmax.f32 %v732, 0.0
    %v751 = vmax.f32 %v737, 0.0
    %v752 = vmax.f32 %v742, 0.0
    %v753 = vmax.f32 %v747, 0.0
    %s754 = scalar_lea.vmem %s8, 64
    %v755 = vld [vmem:[%s754] sm:$0xff]
    %v756 = vld [vmem:[%s754 + $0x8] sm:$0xff]
    %v757 = vld [vmem:[%s754 + $0x10] sm:$0xff]
    %v758 = vld [vmem:[%s754 + $0x18] sm:$0xff]
    %v759 = vld [vmem:[%s754 + $0x20] sm:$0xff]
    %v760 = vld [vmem:[%s754 + $0x28] sm:$0xff]
    %v761 = vld [vmem:[%s754 + $0x30] sm:$0xff]
    %v762 = vld [vmem:[%s754 + $0x38] sm:$0xff]
    %s763 = scalar_lea.vmem %s9, 1
    %v764 = vld [vmem:[%s763] sm:$0x1]
    %v766 = vlaneseq
    %v767 = vshrl.u32 %v766, 7
    %v768 = vsub.s32 0, %v767
    %v769 = vrot.slane %v764, %v768
    %v772 = vsel %vm156, %v750, 0
    %v775 = vsel %vm156, %v751, 0
    %v778 = vsel %vm156, %v752, 0
    %v781 = vsel %vm156, %v753, 0
    %783 = vmatprep.subr.mxu0 0.0
    %784 = vmatpush1.msra.mxu0 %v755
    %785 = vmatprep.subr.mxu0 0.0
    %786 = vmatpush1.msra.mxu0 %v756
    %787 = vmatprep.subr.mxu0 0.0
    %788 = vmatpush1.msra.mxu0 %v757
    %789 = vmatprep.subr.mxu0 0.0
    %790 = vmatpush1.msra.mxu0 %v758
    %791 = vmatprep.subr.mxu0 0.0
    %792 = vmatpush1.msra.mxu0 %v759
    %793 = vmatprep.subr.mxu0 0.0
    %794 = vmatpush1.msra.mxu0 %v760
    %795 = vmatprep.subr.mxu0 0.0
    %796 = vmatpush1.msra.mxu0 %v761
    %797 = vmatprep.subr.mxu0 0.0
    %798 = vmatpush1.msra.mxu0 %v762
    %799 = vmatprep.subr.mxu0 0.0
    %800 = vmatpush1.msra.mxu0 0.0
    %801 = vmatprep.subr.mxu0 0.0
    %802 = vmatpush1.msra.mxu0 0.0
    %803 = vmatprep.subr.mxu0 0.0
    %804 = vmatpush1.msra.mxu0 0.0
    %805 = vmatprep.subr.mxu0 0.0
    %806 = vmatpush1.msra.mxu0 0.0
    %807 = vmatprep.subr.mxu0 0.0
    %808 = vmatpush1.msra.mxu0 0.0
    %809 = vmatprep.subr.mxu0 0.0
    %810 = vmatpush1.msra.mxu0 0.0
    %811 = vmatprep.subr.mxu0 0.0
    %812 = vmatpush1.msra.mxu0 0.0
    %813 = vmatprep.subr.mxu0 0.0
    %814 = vmatpush1.msra.mxu0 0.0
    %815 = vmatprep.subr.mxu0 0.0
    %816 = vmatpush1.msra.mxu0 0.0
    %817 = vmatprep.subr.mxu0 0.0
    %818 = vmatpush1.msra.mxu0 0.0
    %819 = vmatprep.subr.mxu0 0.0
    %820 = vmatpush1.msra.mxu0 0.0
    %821 = vmatprep.subr.mxu0 0.0
    %822 = vmatpush1.msra.mxu0 0.0
    %823 = vmatprep.subr.mxu0 0.0
    %824 = vmatpush1.msra.mxu0 0.0
    %825 = vmatprep.subr.mxu0 0.0
    %826 = vmatpush1.msra.mxu0 0.0
    %827 = vmatprep.subr.mxu0 0.0
    %828 = vmatpush1.msra.mxu0 0.0
    %829 = vmatprep.subr.mxu0 0.0
    %830 = vmatpush1.msra.mxu0 0.0
    %831 = vmatprep.subr.mxu0 0.0
    %832 = vmatpush1.msra.mxu0 0.0
    %833 = vmatprep.subr.mxu0 0.0
    %834 = vmatpush1.msra.mxu0 0.0
    %835 = vmatprep.subr.mxu0 0.0
    %836 = vmatpush1.msra.mxu0 0.0
    %837 = vmatprep.subr.mxu0 0.0
    %838 = vmatpush1.msra.mxu0 0.0
    %839 = vmatprep.subr.mxu0 0.0
    %840 = vmatpush1.msra.mxu0 0.0
    %841 = vmatprep.subr.mxu0 0.0
    %842 = vmatpush1.msra.mxu0 0.0
    %843 = vmatprep.subr.mxu0 0.0
    %844 = vmatpush1.msra.mxu0 0.0
    %845 = vmatprep.subr.mxu0 0.0
    %846 = vmatpush1.msra.mxu0 0.0
    %847 = vmatprep.mubr.f32.mxu0 0.0
    %848 = vmatmul.mubr.f32.gmra.mrb[0].mxu0 %v772
    %v849 = vpop.f32.mrb[0].mxu0
    %v850 = vadd.f32 %v769, %v849
    %v851 = vpop.f32.mrb[0].mxu0
    %852 = vmatprep.mubr.f32.mxu0 0.0
    %853 = vmatmul.mubr.f32.gmra.mrb[0].mxu0 %v775
    %v854 = vpop.f32.mrb[0].mxu0
    %v855 = vadd.f32 %v769, %v854
    %v856 = vpop.f32.mrb[0].mxu0
    %857 = vmatprep.mubr.f32.mxu0 0.0
    %858 = vmatmul.mubr.f32.gmra.mrb[0].mxu0 %v778
    %v859 = vpop.f32.mrb[0].mxu0
    %v860 = vadd.f32 %v769, %v859
    %v861 = vpop.f32.mrb[0].mxu0
    %862 = vmatprep.mubr.f32.mxu0 0.0
    %863 = vmatmul.mubr.f32.gmra.mrb[0].mxu0 %v781
    %v864 = vpop.f32.mrb[0].mxu0
    %v865 = vadd.f32 %v769, %v864
    %v866 = vpop.f32.mrb[0].mxu0
    %867 = vdwg.mxu0
    %870 = vrot.lane.b32.xlu0 %v860, 32
    %v871 = vpop.permute.xlu0 %870
    %872 = vrot.lane.b32.xlu0 %v865, 32
    %v873 = vpop.permute.xlu0 %872
    %v876 = vsel %vm123, %v850, %v871
    %v877 = vsel %vm123, %v855, %v873
    %v878 = vadd.f32 %v636, %v876
    %v879 = vadd.f32 %v637, %v877
    %v880 = vld [vmem:[%s10] sm:$0xff]
    %v881 = vld [vmem:[%s11] sm:$0xff]
    %883 = vset.pattern.permute.xlu0 0
    %884 = vperm.xlu0 %883, %v881
    %v885 = vpop.permute.xlu0 %884
    %v888 = vsel %vm213, %v880, 0
    %890 = vmatprep.subr.mxu0 0.0
    %891 = vmatpush1.msra.mxu0 %v878
    %892 = vmatprep.subr.mxu0 0.0
    %893 = vmatpush1.msra.mxu0 %v879
    %894 = vmatprep.subr.mxu0 0.0
    %895 = vmatpush1.msra.mxu0 0.0
    %896 = vmatprep.subr.mxu0 0.0
    %897 = vmatpush1.msra.mxu0 0.0
    %898 = vmatprep.subr.mxu0 0.0
    %899 = vmatpush1.msra.mxu0 0.0
    %900 = vmatprep.subr.mxu0 0.0
    %901 = vmatpush1.msra.mxu0 0.0
    %902 = vmatprep.subr.mxu0 0.0
    %903 = vmatpush1.msra.mxu0 0.0
    %904 = vmatprep.subr.mxu0 0.0
    %905 = vmatpush1.msra.mxu0 0.0
    %906 = vmatprep.subr.mxu0 0.0
    %907 = vmatpush1.msra.mxu0 0.0
    %908 = vmatprep.subr.mxu0 0.0
    %909 = vmatpush1.msra.mxu0 0.0
    %910 = vmatprep.subr.mxu0 0.0
    %911 = vmatpush1.msra.mxu0 0.0
    %912 = vmatprep.subr.mxu0 0.0
    %913 = vmatpush1.msra.mxu0 0.0
    %914 = vmatprep.subr.mxu0 0.0
    %915 = vmatpush1.msra.mxu0 0.0
    %916 = vmatprep.subr.mxu0 0.0
    %917 = vmatpush1.msra.mxu0 0.0
    %918 = vmatprep.subr.mxu0 0.0
    %919 = vmatpush1.msra.mxu0 0.0
    %920 = vmatprep.subr.mxu0 0.0
    %921 = vmatpush1.msra.mxu0 0.0
    %922 = vmatprep.subr.mxu0 0.0
    %923 = vmatpush1.msra.mxu0 0.0
    %924 = vmatprep.subr.mxu0 0.0
    %925 = vmatpush1.msra.mxu0 0.0
    %926 = vmatprep.subr.mxu0 0.0
    %927 = vmatpush1.msra.mxu0 0.0
    %928 = vmatprep.subr.mxu0 0.0
    %929 = vmatpush1.msra.mxu0 0.0
    %930 = vmatprep.subr.mxu0 0.0
    %931 = vmatpush1.msra.mxu0 0.0
    %932 = vmatprep.subr.mxu0 0.0
    %933 = vmatpush1.msra.mxu0 0.0
    %934 = vmatprep.subr.mxu0 0.0
    %935 = vmatpush1.msra.mxu0 0.0
    %936 = vmatprep.subr.mxu0 0.0
    %937 = vmatpush1.msra.mxu0 0.0
    %938 = vmatprep.subr.mxu0 0.0
    %939 = vmatpush1.msra.mxu0 0.0
    %940 = vmatprep.subr.mxu0 0.0
    %941 = vmatpush1.msra.mxu0 0.0
    %942 = vmatprep.subr.mxu0 0.0
    %943 = vmatpush1.msra.mxu0 0.0
    %944 = vmatprep.subr.mxu0 0.0
    %945 = vmatpush1.msra.mxu0 0.0
    %946 = vmatprep.subr.mxu0 0.0
    %947 = vmatpush1.msra.mxu0 0.0
    %948 = vmatprep.subr.mxu0 0.0
    %949 = vmatpush1.msra.mxu0 0.0
    %950 = vmatprep.subr.mxu0 0.0
    %951 = vmatpush1.msra.mxu0 0.0
    %952 = vmatprep.subr.mxu0 0.0
    %953 = vmatpush1.msra.mxu0 0.0
    %954 = vmatprep.mubr.f32.mxu0 0.0
    %955 = vmatmul.mubr.f32.gmra.mrb[0].mxu0 %v888
    %v956 = vpop.f32.mrb[0].mxu0
    %v957 = vadd.f32 %v885, %v956
    %v958 = vpop.f32.mrb[0].mxu0
    %959 = vdwg.mxu0
    %v960 = vsub.f32 %v957, %v196
    %v961 = vlaneseq
    %v962 = vshrl.u32 %v961, 7
    %v963 = vsub.s32 0, %v962
    %v964 = vrot.slane %v155, %v963
    %v965 = vmul.f32 %v960, %v964
    %v966 = vmul.f32 %v965, %v184
    %v967 = vadd.f32 %v966, %v167
    %968 = vst.msk [vmem:[#allocation2] sm:$0xff] %vm123, %v967
    %970 = vrot.lane.b32.xlu0 %v967, 96
    %v971 = vpop.permute.xlu0 %970
    %s973 = scalar_lea.vmem [#allocation2], 8
    %974 = vst.msk [vmem:[%s973] sm:$0xff] %vm123, %v971
    // Predicated region
    $region50: #{tpu_custom_call.1} parent=1 // pred_check
      _
    $region51: #{tpu_custom_call.1} parent=1 // pred_check_branch
      %976 = sbr.rel (0) target = $region53
    $region52: #{tpu_custom_call.1} parent=1 // pred_region
      %s978 = ssub.s32 256, 256
      %979 = vsyncadd [#allocation3], %s978
      %s980 = sshll.u32 [#allocation2], 4
      %s981 = int_to_ptr.vmem [resolvable:$true] %s980
      %986 = dma.vmem_to_hbm [thread:$0]  %s981, 256, %s12, [#allocation3], 128, 128, 8
    $region53: #{tpu_custom_call.1} parent=1 // pred_fallthru
      _
    // Predicated region
    $region54: #{tpu_custom_call.1} parent=1 // pred_check
      _
    $region55: #{tpu_custom_call.1} parent=1 // pred_check_branch
      %988 = sbr.rel (0) target = $region57
    $region56: #{tpu_custom_call.1} parent=1 // pred_region
      %989 = dma.done [#allocation3], 256
    $region57: #{tpu_custom_call.1} parent=1 // pred_fallthru
      _
    %990 = vsyncpa [#allocation3], 1

</llo_original>
